<compile_context>
chip_gen: v7x
topology: tpu7x:2x2x1
jax: 0.10.0
libtpu: 0.0.40
codegen_flags: <defaults>
</compile_context>

<pallas_src>
import math

import jax
import jax.numpy as jnp
from jax.experimental import pallas as pl
from jax.experimental.pallas import tpu as pltpu


def _make_kernel(step, bb, hidden_dim, seq_len, ragged):
    H = hidden_dim

    def kernel(x_ref, wf_ref, bf_ref, wcp_ref, bcp_ref, out_ref, h_ref):
        w = pl.program_id(1)

        # h is carried across the sequential ("arbitrary") window axis.
        @pl.when(w == 0)
        def _():
            h_ref[...] = jnp.zeros_like(h_ref)

        # ---- one MXU matmul per window for all four projections -----------
        xw = x_ref[...]                                    # (step*bb, D)
        proj = jnp.dot(xw, wf_ref[...],
                       preferred_element_type=jnp.float32) + bf_ref[...]
        b_all = proj[:, 0 * H:1 * H]                       # proj_B   (no bias)
        delta = jax.nn.softplus(proj[:, 1 * H:2 * H])      # proj_delta
        x_in = proj[:, 2 * H:3 * H]                        # input_proj
        c_all = proj[:, 3 * H:4 * H]                       # proj_C   (no bias)
        decay = 1.0 - delta                                # (step*bb, H)
        drive = delta * (x_in + b_all)                     # (step*bb, H)

        if ragged:
            # Only the final window can be short; padded timesteps replicate
            # the last valid row of x, so only the h-update needs masking
            # (the window-end C row then equals C of the last valid step).
            valid = jnp.minimum(step, seq_len - w * step)

        # ---- selective scan: `step` aligned FMAs on a (bb, H) tile ---------
        # Windows are handled by the grid; only step_size iterations here,
        # all slice offsets are static multiples of 8 sublanes.
        h = h_ref[...]
        for t in range(step):
            h_new = decay[t * bb:(t + 1) * bb, :] * h + \
                    drive[t * bb:(t + 1) * bb, :]
            if ragged:
                h = jnp.where(t < valid, h_new, h)
            else:
                h = h_new
        h_ref[...] = h

        # ---- window output: C at the window's last timestep ----------------
        c_last = c_all[(step - 1) * bb:step * bb, :]       # (bb, H)
        win = c_last * h                                   # (bb, H) f32
        out = jnp.dot(win.astype(wcp_ref.dtype), wcp_ref[...],
                      preferred_element_type=jnp.float32) + bcp_ref[...]
        out_ref[...] = out.astype(out_ref.dtype)

    return kernel


def s6_history_compress(x, params, compression_ratio=0.5,
                        use_bf16_matmul=True, batch_block=None):
    """x: (seq_len, batch, input_dim) f32 -> (num_windows, batch, input_dim) f32."""
    S, B, D = x.shape
    H = params["W_B"].shape[1]

    compressed_len = max(1, int(S * compression_ratio))
    step = S // compressed_len
    W = -(-S // step)                     # ceil: number of windows
    S_pad = W * step
    ragged = S_pad != S

    # ---- fused time-independent projection weights (done once in XLA) ------
    # columns: [ W_B | W_delta | W_in | W_C ]
    w_fused = jnp.concatenate(
        [params["W_B"], params["W_delta"], params["W_in"], params["W_C"]],
        axis=1)                                            # (D, 4H)
    b_fused = jnp.concatenate(
        [jnp.zeros((H,), jnp.float32), params["b_delta"],
         params["b_in"], jnp.zeros((H,), jnp.float32)]).reshape(1, 4 * H)
    w_cp = params["W_comp"]                                # (H, D)
    b_cp = params["b_comp"].reshape(1, D)                  # (1, D)

    # ---- pad sequence (replicate last timestep; masked in-kernel) ----------
    if ragged:
        x = jnp.concatenate(
            [x, jnp.broadcast_to(x[-1:], (S_pad - S, B, D))], axis=0)

    # ---- pad batch to a multiple of 8 sublanes ------------------------------
    B_pad = -(-B // 8) * 8
    if B_pad > B:
        x = jnp.concatenate(
            [x, jnp.zeros((S_pad, B_pad - B, D), x.dtype)], axis=1)

    bb = batch_block if batch_block is not None else B_pad
    assert B_pad % bb == 0 and bb % 8 == 0, (B_pad, bb)
    nbb = B_pad // bb

    # ---- one-time relayout: (S_pad, B_pad, D) -> (nbb, W, step*bb, D) -------
    # Within a window block, rows are t-major then batch (contiguous slab).
    x_r = (x.reshape(W, step, nbb, bb, D)
            .transpose(2, 0, 1, 3, 4)
            .reshape(nbb, W, step * bb, D))

    if use_bf16_matmul:
        # bf16 MXU operands on all generations; f32 accumulation; the
        # recurrence, softplus and h stay f32.
        x_r = x_r.astype(jnp.bfloat16)
        w_fused = w_fused.astype(jnp.bfloat16)
        w_cp = w_cp.astype(jnp.bfloat16)

    kernel = _make_kernel(step, bb, H, S, ragged)

    # ---- cost estimate & VMEM budget ---------------------------------------
    flops = int(2 * S_pad * B_pad * D * 4 * H          # fused projections
                + 2 * W * B_pad * H * D                # compress_proj
                + 8 * S_pad * B_pad * H)               # scan elementwise
    transcendentals = int(S_pad * B_pad * H)
    bytes_accessed = int(
        x_r.dtype.itemsize * x_r.size
        + w_fused.dtype.itemsize * w_fused.size + 4 * b_fused.size
        + w_cp.dtype.itemsize * w_cp.size + 4 * b_cp.size
        + 4 * nbb * W * bb * D)

    elt = x_r.dtype.itemsize
    working_set = (2 * step * bb * D * elt             # x window, 2-buffered
                   + D * 4 * H * elt + 4 * 4 * H       # fused weights + bias
                   + H * D * elt + 4 * D               # compress weights
                   + 2 * bb * D * 4                    # output block, 2-buf
                   + bb * H * 4                        # h scratch
                   + 8 * step * bb * 4 * H * 4)        # per-window temps
    vmem_limit = int(min(32 * 1024 * 1024,
                         max(8 * 1024 * 1024, 4 * working_set)))

    out_r = pl.pallas_call(
        kernel,
        out_shape=jax.ShapeDtypeStruct((nbb, W, bb, D), jnp.float32),
        grid=(nbb, W),
        in_specs=[
            pl.BlockSpec((None, None, step * bb, D),
                         lambda b, w: (b, w, 0, 0)),          # x window
            pl.BlockSpec((D, 4 * H), lambda b, w: (0, 0)),    # fused weights
            pl.BlockSpec((1, 4 * H), lambda b, w: (0, 0)),    # fused bias
            pl.BlockSpec((H, D), lambda b, w: (0, 0)),        # W_comp
            pl.BlockSpec((1, D), lambda b, w: (0, 0)),        # b_comp
        ],
        out_specs=pl.BlockSpec((None, None, bb, D),
                               lambda b, w: (b, w, 0, 0)),
        scratch_shapes=[pltpu.VMEM((bb, H), jnp.float32)],    # carried h
        compiler_params=pltpu.CompilerParams(
            dimension_semantics=("parallel", "arbitrary"),
            vmem_limit_bytes=vmem_limit),
        cost_estimate=pl.CostEstimate(
            flops=flops, transcendentals=transcendentals,
            bytes_accessed=bytes_accessed),
    )(x_r, w_fused, b_fused, w_cp, b_cp)

    # (nbb, W, bb, D) -> (W, B, D); free row-major reshapes outside the kernel.
    out = (out_r.transpose(1, 0, 2, 3)
                .reshape(W, B_pad, D)[:, :B, :])
    return out


def s6_history_compress_ref(x, params, compression_ratio=0.5):
    """Pure-JAX reference matching the PyTorch forward semantics."""
    seq_len, batch, input_dim = x.shape
    hidden_dim = params["W_B"].shape[1]
    compressed_len = max(1, int(seq_len * compression_ratio))
    step_size = seq_len // compressed_len

    h = jnp.zeros((batch, hidden_dim), jnp.float32)
    outs = []
    for i in range(0, seq_len, step_size):
        end = min(i + step_size, seq_len)
        window_output = None
        for t in range(i, end):
            x_t = x[t]
            B_t = x_t @ params["W_B"]
            C_t = x_t @ params["W_C"]
            delta_t = jax.nn.softplus(x_t @ params["W_delta"] + params["b_delta"])
            x_proj = x_t @ params["W_in"] + params["b_in"]
            h = (1.0 - delta_t) * h + delta_t * (x_proj + B_t)
            window_output = C_t * h
        outs.append(window_output @ params["W_comp"] + params["b_comp"])
    return jnp.stack(outs, axis=0)


def init_params(key, input_dim, hidden_dim):
    """Deterministic synthetic parameters (shapes match the PyTorch module)."""
    keys = jax.random.split(key, 8)

    def xavier(k, fan_in, fan_out):
        bound = math.sqrt(6.0 / (fan_in + fan_out))
        return jax.random.uniform(k, (fan_in, fan_out), jnp.float32, -bound, bound)

    def lin_bias(k, fan_in, fan_out):
        bound = 1.0 / math.sqrt(fan_in)
        return jax.random.uniform(k, (fan_out,), jnp.float32, -bound, bound)

    return {
        # proj_B / proj_C (bias=False), proj_delta / input_proj (bias=True)
        "W_B": xavier(keys[0], input_dim, hidden_dim),
        "W_C": xavier(keys[1], input_dim, hidden_dim),
        "W_delta": xavier(keys[2], input_dim, hidden_dim),
        "b_delta": lin_bias(keys[3], input_dim, hidden_dim),
        "W_in": xavier(keys[4], input_dim, hidden_dim),
        "b_in": lin_bias(keys[5], input_dim, hidden_dim),
        # compress_proj: (hidden_dim -> input_dim), bias=True
        "W_comp": xavier(keys[6], hidden_dim, input_dim),
        "b_comp": lin_bias(keys[7], hidden_dim, input_dim),
    }


if __name__ == "__main__":
    seq_len, batch, input_dim, hidden_dim = 8, 2, 16, 32
    compression_ratio = 0.5

    root = jax.random.PRNGKey(0)
    kx, kp, kx2 = jax.random.split(root, 3)
    x = jax.random.normal(kx, (seq_len, batch, input_dim), jnp.float32)
    params = init_params(kp, input_dim, hidden_dim)

    # --- exact f32 path -----------------------------------------------------
    ref = s6_history_compress_ref(x, params, compression_ratio)
    out = s6_history_compress(x, params, compression_ratio,
                              use_bf16_matmul=False)
    out = jax.block_until_ready(out)
    assert out.shape == ref.shape, (out.shape, ref.shape)
    assert jnp.allclose(out, ref, atol=1e-4, rtol=1e-4), \
        float(jnp.max(jnp.abs(out - ref)))

    # --- ragged sequence (last window shorter), exact f32 path ---------------
    x_r = jax.random.normal(kx2, (7, batch, input_dim), jnp.float32)
    ref_r = s6_history_compress_ref(x_r, params, compression_ratio)
    out_r = s6_history_compress(x_r, params, compression_ratio,
                                use_bf16_matmul=False)
    out_r = jax.block_until_ready(out_r)
    assert out_r.shape == ref_r.shape, (out_r.shape, ref_r.shape)
    assert jnp.allclose(out_r, ref_r, atol=1e-4, rtol=1e-4), \
        float(jnp.max(jnp.abs(out_r - ref_r)))

    # --- default bf16-matmul path (f32 accumulation), looser tolerance -------
    out_bf16 = s6_history_compress(x, params, compression_ratio)
    out_bf16 = jax.block_until_ready(out_bf16)
    assert jnp.allclose(out_bf16, ref, atol=5e-2, rtol=5e-2), \
        float(jnp.max(jnp.abs(out_bf16 - ref)))

    print("KERNEL_OK")
</pallas_src>

<mosaic_0001>
module attributes {stable_mosaic.version = 11 : i64} {
  func.func @kernel(%arg0: i32, %arg1: i32, %arg2: memref<1x1x16x16xf32, #tpu.memory_space<vmem>>, %arg3: memref<16x128xf32, #tpu.memory_space<vmem>>, %arg4: memref<1x128xf32, #tpu.memory_space<vmem>>, %arg5: memref<32x16xf32, #tpu.memory_space<vmem>>, %arg6: memref<1x16xf32, #tpu.memory_space<vmem>>, %arg7: memref<1x1x8x16xf32, #tpu.memory_space<vmem>>, %arg8: memref<8x32xf32, #tpu.memory_space<vmem>>) attributes {dimension_semantics = [#tpu.dimension_semantics<parallel>, #tpu.dimension_semantics<arbitrary>], iteration_bounds = array<i64: 1, 4>, scalar_prefetch = 0 : i64, scratch_operands = 1 : i64, tpu.core_type = #tpu.core_type<tc>, window_params = [{transform_indices = @transform_0, window_bounds = array<i64: 1, 1, 16, 16>}, {pipeline_mode = #tpu.pipeline_mode<synchronous>, transform_indices = @transform_1, window_bounds = array<i64: 16, 128>}, {pipeline_mode = #tpu.pipeline_mode<synchronous>, transform_indices = @transform_2, window_bounds = array<i64: 1, 128>}, {pipeline_mode = #tpu.pipeline_mode<synchronous>, transform_indices = @transform_3, window_bounds = array<i64: 32, 16>}, {pipeline_mode = #tpu.pipeline_mode<synchronous>, transform_indices = @transform_4, window_bounds = array<i64: 1, 16>}, {transform_indices = @transform_5, window_bounds = array<i64: 1, 1, 8, 16>}]} {
    %c0_i32 = arith.constant 0 : i32
    %0 = arith.cmpi eq, %arg1, %c0_i32 : i32
    %1 = arith.extui %0 : i1 to i32
    %c0_i32_0 = arith.constant 0 : i32
    %2 = arith.cmpi ne, %1, %c0_i32_0 : i32
    scf.if %2 {
      %cst_24 = arith.constant 0.000000e+00 : f32
      %52 = vector.broadcast %cst_24 : f32 to vector<8x32xf32>
      %c0_25 = arith.constant 0 : index
      %c0_26 = arith.constant 0 : index
      %53 = vector.load %arg8[%c0_25, %c0_26] : memref<8x32xf32, #tpu.memory_space<vmem>>, vector<8x32xf32>
      tpu.vector_store %arg8[%c0_25, %c0_26], %52 {strides = array<i32>} : memref<8x32xf32, #tpu.memory_space<vmem>>, vector<8x32xf32>,
    } else {
    }
    %c0 = arith.constant 0 : index
    %c0_1 = arith.constant 0 : index
    %c0_2 = arith.constant 0 : index
    %c0_3 = arith.constant 0 : index
    %3 = vector.load %arg2[%c0, %c0_1, %c0_2, %c0_3] : memref<1x1x16x16xf32, #tpu.memory_space<vmem>>, vector<1x1x16x16xf32>
    %4 = vector.shape_cast %3 : vector<1x1x16x16xf32> to vector<16x16xf32>
    %c0_4 = arith.constant 0 : index
    %c0_5 = arith.constant 0 : index
    %5 = vector.load %arg3[%c0_4, %c0_5] : memref<16x128xf32, #tpu.memory_space<vmem>>, vector<16x128xf32>
    %cst = arith.constant dense<0.000000e+00> : vector<16x128xf32>
    %6 = tpu.matmul %4, %5, %cst {dimension_numbers = #tpu.dot_dimension_numbers<[1], [0], [0], [1], [0, 0, 1, 1], [], []>} : vector<16x16xf32>, vector<16x128xf32>, vector<16x128xf32> -> vector<16x128xf32>
    %c0_6 = arith.constant 0 : index
    %c0_7 = arith.constant 0 : index
    %7 = vector.load %arg4[%c0_6, %c0_7] : memref<1x128xf32, #tpu.memory_space<vmem>>, vector<1x128xf32>
    %8 = vector.broadcast %7 : vector<1x128xf32> to vector<16x128xf32>
    %9 = arith.addf %6, %8 : vector<16x128xf32>
    %10 = vector.extract_strided_slice %9 {offsets = [0, 0], sizes = [16, 32], strides = [1, 1]} : vector<16x128xf32> to vector<16x32xf32>
    %11 = vector.extract_strided_slice %9 {offsets = [0, 32], sizes = [16, 32], strides = [1, 1]} : vector<16x128xf32> to vector<16x32xf32>
    %cst_8 = arith.constant 0.000000e+00 : f32
    %12 = vector.broadcast %cst_8 : f32 to vector<16x32xf32>
    %13 = arith.maximumf %11, %12 : vector<16x32xf32>
    %14 = vector.broadcast %cst_8 : f32 to vector<16x32xf32>
    %15 = arith.subf %11, %14 : vector<16x32xf32>
    %16 = arith.cmpf one, %15, %15 : vector<16x32xf32>
    %17 = vector.broadcast %cst_8 : f32 to vector<16x32xf32>
    %18 = arith.addf %11, %17 : vector<16x32xf32>
    %19 = math.absf %15 : vector<16x32xf32>
    %cst_9 = arith.constant 0.000000e+00 : f32
    %20 = vector.broadcast %cst_9 : f32 to vector<16x32xf32>
    %21 = arith.subf %20, %19 : vector<16x32xf32>
    %22 = math.exp %21 : vector<16x32xf32>
    %23 = math.log1p %22 : vector<16x32xf32>
    %24 = arith.addf %13, %23 : vector<16x32xf32>
    %25 = arith.select %16, %18, %24 : vector<16x32xi1>, vector<16x32xf32>
    %26 = vector.extract_strided_slice %9 {offsets = [0, 64], sizes = [16, 32], strides = [1, 1]} : vector<16x128xf32> to vector<16x32xf32>
    %27 = vector.extract_strided_slice %9 {offsets = [0, 96], sizes = [16, 32], strides = [1, 1]} : vector<16x128xf32> to vector<16x32xf32>
    %cst_10 = arith.constant 1.000000e+00 : f32
    %28 = vector.broadcast %cst_10 : f32 to vector<16x32xf32>
    %29 = arith.subf %28, %25 : vector<16x32xf32>
    %30 = arith.addf %26, %10 : vector<16x32xf32>
    %31 = arith.mulf %25, %30 : vector<16x32xf32>
    %c0_11 = arith.constant 0 : index
    %c0_12 = arith.constant 0 : index
    %32 = vector.load %arg8[%c0_11, %c0_12] : memref<8x32xf32, #tpu.memory_space<vmem>>, vector<8x32xf32>
    %33 = vector.extract_strided_slice %29 {offsets = [0, 0], sizes = [8, 32], strides = [1, 1]} : vector<16x32xf32> to vector<8x32xf32>
    %34 = arith.mulf %33, %32 : vector<8x32xf32>
    %35 = vector.extract_strided_slice %31 {offsets = [0, 0], sizes = [8, 32], strides = [1, 1]} : vector<16x32xf32> to vector<8x32xf32>
    %36 = arith.addf %34, %35 : vector<8x32xf32>
    %37 = vector.extract_strided_slice %29 {offsets = [8, 0], sizes = [8, 32], strides = [1, 1]} : vector<16x32xf32> to vector<8x32xf32>
    %38 = arith.mulf %37, %36 : vector<8x32xf32>
    %39 = vector.extract_strided_slice %31 {offsets = [8, 0], sizes = [8, 32], strides = [1, 1]} : vector<16x32xf32> to vector<8x32xf32>
    %40 = arith.addf %38, %39 : vector<8x32xf32>
    %c0_13 = arith.constant 0 : index
    %c0_14 = arith.constant 0 : index
    %41 = vector.load %arg8[%c0_13, %c0_14] : memref<8x32xf32, #tpu.memory_space<vmem>>, vector<8x32xf32>
    tpu.vector_store %arg8[%c0_13, %c0_14], %40 {strides = array<i32>} : memref<8x32xf32, #tpu.memory_space<vmem>>, vector<8x32xf32>,
    %42 = vector.extract_strided_slice %27 {offsets = [8, 0], sizes = [8, 32], strides = [1, 1]} : vector<16x32xf32> to vector<8x32xf32>
    %43 = arith.mulf %42, %40 : vector<8x32xf32>
    %c0_15 = arith.constant 0 : index
    %c0_16 = arith.constant 0 : index
    %44 = vector.load %arg5[%c0_15, %c0_16] : memref<32x16xf32, #tpu.memory_space<vmem>>, vector<32x16xf32>
    %cst_17 = arith.constant dense<0.000000e+00> : vector<8x16xf32>
    %45 = tpu.matmul %43, %44, %cst_17 {dimension_numbers = #tpu.dot_dimension_numbers<[1], [0], [0], [1], [0, 0, 1, 1], [], []>} : vector<8x32xf32>, vector<32x16xf32>, vector<8x16xf32> -> vector<8x16xf32>
    %c0_18 = arith.constant 0 : index
    %c0_19 = arith.constant 0 : index
    %46 = vector.load %arg6[%c0_18, %c0_19] : memref<1x16xf32, #tpu.memory_space<vmem>>, vector<1x16xf32>
    %47 = vector.broadcast %46 : vector<1x16xf32> to vector<8x16xf32>
    %48 = arith.addf %45, %47 : vector<8x16xf32>
    %c0_20 = arith.constant 0 : index
    %c0_21 = arith.constant 0 : index
    %c0_22 = arith.constant 0 : index
    %c0_23 = arith.constant 0 : index
    %49 = vector.load %arg7[%c0_20, %c0_21, %c0_22, %c0_23] : memref<1x1x8x16xf32, #tpu.memory_space<vmem>>, vector<1x1x8x16xf32>
    %50 = vector.shape_cast %49 : vector<1x1x8x16xf32> to vector<8x16xf32>
    %51 = vector.shape_cast %48 : vector<8x16xf32> to vector<1x1x8x16xf32>
    tpu.vector_store %arg7[%c0_20, %c0_21, %c0_22, %c0_23], %51 {strides = array<i32>} : memref<1x1x8x16xf32, #tpu.memory_space<vmem>>, vector<1x1x8x16xf32>,
    return
  }
  func.func @transform_0(%arg0: i32, %arg1: i32) -> (i32, i32, i32, i32) {
    %c0_i32 = arith.constant 0 : i32
    %c0_i32_0 = arith.constant 0 : i32
    %c0_i32_1 = arith.constant 0 : i32
    return %arg0, %arg1, %c0_i32, %c0_i32_0 : i32, i32, i32, i32
  }
  func.func @transform_1(%arg0: i32, %arg1: i32) -> (i32, i32) {
    %c0_i32 = arith.constant 0 : i32
    %c0_i32_0 = arith.constant 0 : i32
    %c0_i32_1 = arith.constant 0 : i32
    return %c0_i32, %c0_i32_0 : i32, i32
  }
  func.func @transform_2(%arg0: i32, %arg1: i32) -> (i32, i32) {
    %c0_i32 = arith.constant 0 : i32
    %c0_i32_0 = arith.constant 0 : i32
    %c0_i32_1 = arith.constant 0 : i32
    return %c0_i32, %c0_i32_0 : i32, i32
  }
  func.func @transform_3(%arg0: i32, %arg1: i32) -> (i32, i32) {
    %c0_i32 = arith.constant 0 : i32
    %c0_i32_0 = arith.constant 0 : i32
    %c0_i32_1 = arith.constant 0 : i32
    return %c0_i32, %c0_i32_0 : i32, i32
  }
  func.func @transform_4(%arg0: i32, %arg1: i32) -> (i32, i32) {
    %c0_i32 = arith.constant 0 : i32
    %c0_i32_0 = arith.constant 0 : i32
    %c0_i32_1 = arith.constant 0 : i32
    return %c0_i32, %c0_i32_0 : i32, i32
  }
  func.func @transform_5(%arg0: i32, %arg1: i32) -> (i32, i32, i32, i32) {
    %c0_i32 = arith.constant 0 : i32
    %c0_i32_0 = arith.constant 0 : i32
    %c0_i32_1 = arith.constant 0 : i32
    return %arg0, %arg1, %c0_i32, %c0_i32_0 : i32, i32, i32, i32
  }
}

</mosaic_0001>

<llo_original>
// kernel: tpu_custom_call.1
$region0: #{tpu_custom_call.1}
  #allocation0 [shape = 'u32[]', space=smem, size = 0x4, offset = 0x4, fixed_abs, tag = 'smem constant byte address 0x4 - core index']
  #allocation1 [shape = 'u32[144,128]{1,0:T(1,128)}', space=vmem, size = 0x12000, scoped, tag = 'internal scratch']
  #allocation2 [shape = 'f32[8,32]{1,0:T(8,128)}', space=vmem, size = 0x1000, scoped, tag = 'scratch operand']
  %s0 = inlined_call_operand.hbm [shape: f32[1,4,16,16], index: 0, kind: input, shape index: {}]
  %s1 = inlined_call_operand.vmem [shape: f32[16,128], index: 1, kind: input, shape index: {}]
  %s2 = inlined_call_operand.vmem [shape: f32[1,128], index: 2, kind: input, shape index: {}]
  %s3 = inlined_call_operand.vmem [shape: f32[32,16], index: 3, kind: input, shape index: {}]
  %s4 = inlined_call_operand.vmem [shape: f32[1,16], index: 4, kind: input, shape index: {}]
  %s5 = inlined_call_operand.hbm [shape: f32[1,4,8,16], index: 5, kind: output, shape index: {}]
  %s6 = sld [smem:[#allocation0]]
  $region61: #{tpu_custom_call.1} parent=0
    _
  %s8 = ssub.s32 1, %s6
  %s9 = scalar_select 0, %s8, %s6
  $region1: #{tpu_custom_call.1} parent=0
    #allocation3 [shape = 'u8[16384]{0}', space=vmem, size = 0x4000, scoped, tag = 'input window, operand 0']
    #allocation4 [shape = 's32[2]{0}', space=sflag, size = 0x8, scoped, tag = 'scoped memory for tpu_custom_call.1']
    #allocation5 [shape = 's32[2]{0}', space=sflag, size = 0x8, scoped, tag = 'scoped memory for tpu_custom_call.1']
    #allocation6 [shape = 'u8[8192]{0}', space=vmem, size = 0x2000, scoped, tag = 'output window, operand 0']
    %10 = vsyncpa [#allocation4], 0
    %s11 = scalar_lea.sflag [#allocation4], 1
    %12 = vsyncpa %s11, 0
    %13 = vsyncpa [#allocation5], 0
    %s14 = scalar_lea.sflag [#allocation5], 1
    %15 = vsyncpa %s14, 0
    loop: start=0, step=1, limit=6
    $region2: #{tpu_custom_call.1} parent=1 // loop_pre_header
      _
    $region3: #{tpu_custom_call.1} parent=1 // loop_header
      %s17 = sphi 0, %s21
      %p18 = scmp.ge.s32.totalorder %s17, 6
      %s24 = sphi 0, %s36
      %s25 = sphi 0, %s32
      %s26 = sphi 0, %s24
      %s27 = sphi 0, %s25
      %s28 = sphi 0, %s26
      %s29 = sphi 0, %s27
      %s41 = sphi 0, %s43
      %s44 = sphi 0, %s41
      %s45 = sphi 0, %s44
      %s61 = sphi 0, %s45
      %s65 = sphi 0, %s65
      %s67 = sphi 0, %s65
      %s68 = sphi 0, %s67
      %s82 = sphi 0, %s68
      %s86 = sphi 0, %s86
      %s88 = sphi 0, %s86
      %s89 = sphi 0, %s88
      %s103 = sphi 0, %s89
      %s107 = sphi 0, %s107
      %s109 = sphi 0, %s107
      %s110 = sphi 0, %s109
      %s124 = sphi 0, %s110
      %s128 = sphi 0, %s128
      %s130 = sphi 0, %s128
      %s131 = sphi 0, %s130
      %s145 = sphi 0, %s131
      %s153 = sphi 0, %s155
      %s156 = sphi 0, %s153
      %s157 = sphi 0, %s156
      %s173 = sphi 0, %s157
    $region4: #{tpu_custom_call.1} parent=1 // loop_header_branch
      %20 = sbr.rel (%p18) target = $region8
    $region5: #{tpu_custom_call.1} parent=1 // loop_body
      %s22 = ssub.s32 %s17, 1
      %s23 = ssub.s32 %s17, 2
      %s30 = sadd.s32 1, %s25
      %p31 = scmp.ge.s32.totalorder %s30, 4
      %s32 = scalar_select %p31, 0, %s30
      %s33 = sadd.s32 1, %s24
      %s34 = scalar_select %p31, %s33, %s24
      %p35 = scmp.ge.s32.totalorder %s34, 1
      %s36 = scalar_select %p35, 0, %s34
      %s37 = ssub.s32 %s24, %s36
      %s38 = ssub.s32 %s25, %s32
      %s39 = sor.u32 %s37, %s38
      %p40 = scmp.eq.s32.totalorder %s39, 0
      %s42 = sadd.s32 %s41, 1
      %s43 = scalar_select %p40, %s41, %s42
      %p46 = pneg %p40
      %p47 = scmp.eq.s32.totalorder %s17, 3
      %p48 = por %p46, %p47
      %p49 = scmp.ne.s32.totalorder %s41, %s44
      %p50 = scmp.eq.s32.totalorder %s17, 0
      %p51 = por %p49, %p50
      %p52 = scmp.ne.s32.totalorder %s41, %s44
      %p53 = scmp.eq.s32.totalorder %s22, 3
      %p54 = por %p52, %p53
      %p55 = scmp.ne.s32.totalorder %s44, %s45
      %p56 = scmp.eq.s32.totalorder %s22, 0
      %p57 = por %p55, %p56
      %p58 = scmp.ne.s32.totalorder %s44, %s45
      %p59 = scmp.eq.s32.totalorder %s23, 3
      %p60 = por %p58, %p59
      %p62 = scmp.ne.s32.totalorder %s45, %s61
      %p63 = scmp.eq.s32.totalorder %s23, 0
      %p64 = por %p62, %p63
      %s66 = sadd.s32 %s65, 1
      %p69 = scmp.eq.s32.totalorder %s17, 3
      %p70 = scmp.ne.s32.totalorder %s65, %s67
      %p71 = scmp.eq.s32.totalorder %s17, 0
      %p72 = por %p70, %p71
      %p73 = scmp.ne.s32.totalorder %s65, %s67
      %p74 = scmp.eq.s32.totalorder %s22, 3
      %p75 = por %p73, %p74
      %p76 = scmp.ne.s32.totalorder %s67, %s68
      %p77 = scmp.eq.s32.totalorder %s22, 0
      %p78 = por %p76, %p77
      %p79 = scmp.ne.s32.totalorder %s67, %s68
      %p80 = scmp.eq.s32.totalorder %s23, 3
      %p81 = por %p79, %p80
      %p83 = scmp.ne.s32.totalorder %s68, %s82
      %p84 = scmp.eq.s32.totalorder %s23, 0
      %p85 = por %p83, %p84
      %s87 = sadd.s32 %s86, 1
      %p90 = scmp.eq.s32.totalorder %s17, 3
      %p91 = scmp.ne.s32.totalorder %s86, %s88
      %p92 = scmp.eq.s32.totalorder %s17, 0
      %p93 = por %p91, %p92
      %p94 = scmp.ne.s32.totalorder %s86, %s88
      %p95 = scmp.eq.s32.totalorder %s22, 3
      %p96 = por %p94, %p95
      %p97 = scmp.ne.s32.totalorder %s88, %s89
      %p98 = scmp.eq.s32.totalorder %s22, 0
      %p99 = por %p97, %p98
      %p100 = scmp.ne.s32.totalorder %s88, %s89
      %p101 = scmp.eq.s32.totalorder %s23, 3
      %p102 = por %p100, %p101
      %p104 = scmp.ne.s32.totalorder %s89, %s103
      %p105 = scmp.eq.s32.totalorder %s23, 0
      %p106 = por %p104, %p105
      %s108 = sadd.s32 %s107, 1
      %p111 = scmp.eq.s32.totalorder %s17, 3
      %p112 = scmp.ne.s32.totalorder %s107, %s109
      %p113 = scmp.eq.s32.totalorder %s17, 0
      %p114 = por %p112, %p113
      %p115 = scmp.ne.s32.totalorder %s107, %s109
      %p116 = scmp.eq.s32.totalorder %s22, 3
      %p117 = por %p115, %p116
      %p118 = scmp.ne.s32.totalorder %s109, %s110
      %p119 = scmp.eq.s32.totalorder %s22, 0
      %p120 = por %p118, %p119
      %p121 = scmp.ne.s32.totalorder %s109, %s110
      %p122 = scmp.eq.s32.totalorder %s23, 3
      %p123 = por %p121, %p122
      %p125 = scmp.ne.s32.totalorder %s110, %s124
      %p126 = scmp.eq.s32.totalorder %s23, 0
      %p127 = por %p125, %p126
      %s129 = sadd.s32 %s128, 1
      %p132 = scmp.eq.s32.totalorder %s17, 3
      %p133 = scmp.ne.s32.totalorder %s128, %s130
      %p134 = scmp.eq.s32.totalorder %s17, 0
      %p135 = por %p133, %p134
      %p136 = scmp.ne.s32.totalorder %s128, %s130
      %p137 = scmp.eq.s32.totalorder %s22, 3
      %p138 = por %p136, %p137
      %p139 = scmp.ne.s32.totalorder %s130, %s131
      %p140 = scmp.eq.s32.totalorder %s22, 0
      %p141 = por %p139, %p140
      %p142 = scmp.ne.s32.totalorder %s130, %s131
      %p143 = scmp.eq.s32.totalorder %s23, 3
      %p144 = por %p142, %p143
      %p146 = scmp.ne.s32.totalorder %s131, %s145
      %p147 = scmp.eq.s32.totalorder %s23, 0
      %p148 = por %p146, %p147
      %s149 = ssub.s32 %s24, %s36
      %s150 = ssub.s32 %s25, %s32
      %s151 = sor.u32 %s149, %s150
      %p152 = scmp.eq.s32.totalorder %s151, 0
      %s154 = sadd.s32 %s153, 1
      %s155 = scalar_select %p152, %s153, %s154
      %p158 = pneg %p152
      %p159 = scmp.eq.s32.totalorder %s17, 3
      %p160 = por %p158, %p159
      %p161 = scmp.ne.s32.totalorder %s153, %s156
      %p162 = scmp.eq.s32.totalorder %s17, 0
      %p163 = por %p161, %p162
      %p164 = scmp.ne.s32.totalorder %s153, %s156
      %p165 = scmp.eq.s32.totalorder %s22, 3
      %p166 = por %p164, %p165
      %p167 = scmp.ne.s32.totalorder %s156, %s157
      %p168 = scmp.eq.s32.totalorder %s22, 0
      %p169 = por %p167, %p168
      %p170 = scmp.ne.s32.totalorder %s156, %s157
      %p171 = scmp.eq.s32.totalorder %s23, 3
      %p172 = por %p170, %p171
      %p174 = scmp.ne.s32.totalorder %s157, %s173
      %p175 = scmp.eq.s32.totalorder %s23, 0
      %p176 = por %p174, %p175
      %p177 = scmp.le.s32.totalorder 1, %s17
      %p178 = scmp.lt.s32.totalorder %s17, 5
      %p179 = pnand %p177, %p178
      %p180 = pneg %p179
      // Predicated region
      $region9: #{tpu_custom_call.1} parent=5 // pred_check
        _
      $region10: #{tpu_custom_call.1} parent=5 // pred_check_branch
        %182 = sbr.rel (%p179) target = $region12
      $region11: #{tpu_custom_call.1} parent=5 // pred_region
        %s183 = ssub.s32 %s17, 1
        // Predicated region
        $region13: #{tpu_custom_call.1} parent=11 // pred_check
          %p184 = pneg %p78
        $region14: #{tpu_custom_call.1} parent=11 // pred_check_branch
          %186 = sbr.rel (%p184) target = $region16
        $region15: #{tpu_custom_call.1} parent=11 // pred_region
          _
        $region16: #{tpu_custom_call.1} parent=11 // pred_fallthru
          _
        // Predicated region
        $region17: #{tpu_custom_call.1} parent=11 // pred_check
          %p187 = pneg %p99
        $region18: #{tpu_custom_call.1} parent=11 // pred_check_branch
          %189 = sbr.rel (%p187) target = $region20
        $region19: #{tpu_custom_call.1} parent=11 // pred_region
          _
        $region20: #{tpu_custom_call.1} parent=11 // pred_fallthru
          _
        // Predicated region
        $region21: #{tpu_custom_call.1} parent=11 // pred_check
          %p190 = pneg %p120
        $region22: #{tpu_custom_call.1} parent=11 // pred_check_branch
          %192 = sbr.rel (%p190) target = $region24
        $region23: #{tpu_custom_call.1} parent=11 // pred_region
          _
        $region24: #{tpu_custom_call.1} parent=11 // pred_fallthru
          _
        // Predicated region
        $region25: #{tpu_custom_call.1} parent=11 // pred_check
          %p193 = pneg %p141
        $region26: #{tpu_custom_call.1} parent=11 // pred_check_branch
          %195 = sbr.rel (%p193) target = $region28
        $region27: #{tpu_custom_call.1} parent=11 // pred_region
          _
        $region28: #{tpu_custom_call.1} parent=11 // pred_fallthru
          _
      $region12: #{tpu_custom_call.1} parent=5 // pred_fallthru
        _
      %p196 = scmp.lt.s32.totalorder %s17, 4
      // Predicated region
      $region29: #{tpu_custom_call.1} parent=5 // pred_check
        %p197 = pneg %p196
      $region30: #{tpu_custom_call.1} parent=5 // pred_check_branch
        %199 = sbr.rel (%p197) target = $region32
      $region31: #{tpu_custom_call.1} parent=5 // pred_region
        // Predicated region
        $region33: #{tpu_custom_call.1} parent=31 // pred_check
          %p200 = pneg %p51
        $region34: #{tpu_custom_call.1} parent=31 // pred_check_branch
          %202 = sbr.rel (%p200) target = $region36
        $region35: #{tpu_custom_call.1} parent=31 // pred_region
          %s203 = sand.u32 %s41, 1
          %s204 = scalar_lea.sflag [#allocation4], %s203
          %s205 = sand.u32 %s41, 1
          %s206 = smul.addr %s205, 16
          %s207 = scalar_lea.vmem [#allocation3], %s206
          %s209 = ssub.s32 256, 256
          %210 = vsyncadd %s204, %s209
          %s211 = smul.addr %s25, 2
          %s212 = smul.addr %s24, 8
          %s213 = sadd.s32 %s211, %s212
          %s214 = smul.addr %s213, 128
          %s215 = scalar_lea.hbm %s0, %s214
          %s216 = sshll.u32 %s207, 4
          %s217 = int_to_ptr.vmem [resolvable:$true] %s216
          %222 = dma.hbm_to_vmem [thread:$0]  %s215, 256, %s217, %s204, 128, 128, 8
        $region36: #{tpu_custom_call.1} parent=31 // pred_fallthru
          _
      $region32: #{tpu_custom_call.1} parent=5 // pred_fallthru
        _
      %p223 = scmp.le.s32.totalorder 1, %s17
      %p224 = scmp.lt.s32.totalorder %s17, 5
      %p225 = pnand %p223, %p224
      %p226 = pneg %p225
      // Predicated region
      $region37: #{tpu_custom_call.1} parent=5 // pred_check
        _
      $region38: #{tpu_custom_call.1} parent=5 // pred_check_branch
        %228 = sbr.rel (%p225) target = $region40
      $region39: #{tpu_custom_call.1} parent=5 // pred_region
        %s229 = ssub.s32 %s17, 1
        %s230 = sand.u32 %s44, 1
        %s231 = scalar_lea.sflag [#allocation4], %s230
        %s232 = sand.u32 %s44, 1
        %s233 = smul.addr %s232, 16
        %s234 = scalar_lea.vmem [#allocation3], %s233
        // Predicated region
        $region41: #{tpu_custom_call.1} parent=39 // pred_check
          %p235 = pneg %p57
        $region42: #{tpu_custom_call.1} parent=39 // pred_check_branch
          %237 = sbr.rel (%p235) target = $region44
        $region43: #{tpu_custom_call.1} parent=39 // pred_region
          %238 = dma.done %s231, 256
        $region44: #{tpu_custom_call.1} parent=39 // pred_fallthru
          _
        %s239 = sand.u32 %s44, 1
        %s240 = scalar_lea.sflag [#allocation4], %s239
        %s241 = sand.u32 %s44, 1
        %s242 = smul.addr %s241, 16
        %s243 = scalar_lea.vmem [#allocation3], %s242
        %p244 = pneg %p57
        %p245 = pneg %p54
        %p246 = pneg %p78
        %p247 = pneg %p75
        %p248 = pneg %p99
        %p249 = pneg %p96
        %p250 = pneg %p120
        %p251 = pneg %p117
        %p252 = pneg %p141
        %p253 = pneg %p138
        %p254 = pneg %p169
        %p255 = pneg %p166
        %s256 = sand.u32 %s156, 1
        %s257 = scalar_lea.sflag [#allocation5], %s256
        %s258 = sand.u32 %s156, 1
        %s259 = smul.addr %s258, 8
        %s260 = scalar_lea.vmem [#allocation6], %s259
        %p261 = scmp.eq.s32.totalorder %s27, 0
        // Predicated region
        $region45: #{tpu_custom_call.1} parent=39 // pred_check
          %p262 = pneg %p261
        $region46: #{tpu_custom_call.1} parent=39 // pred_check_branch
          %264 = sbr.rel (%p262) target = $region48
        $region47: #{tpu_custom_call.1} parent=39 // pred_region
          %vm265 = vcmask 261120
          %266 = vst.msk [vmem:[#allocation2] sm:$0xff] %vm265, 0.0
        $region48: #{tpu_custom_call.1} parent=39 // pred_fallthru
          _
        %v267 = vld [vmem:[%s234] sm:$0xff]
        %v268 = vld [vmem:[%s234 + $0x8] sm:$0xff]
        %v269 = vld [vmem:[%s1] sm:$0xff]
        %v270 = vld [vmem:[%s1 + $0x8] sm:$0xff]
        %v271 = vld [vmem:[%s2] sm:$0x1]
        %v273 = vlaneseq
        %v274 = vshrl.u32 %v273, 7
        %v275 = vsub.s32 0, %v274
        %v276 = vrot.slane %v271, %v275
        %vm278 = vcmask 130048
        %v280 = vsel %vm278, %v267, 0
        %v283 = vsel %vm278, %v268, 0
        %285 = vmatprep.subr.mxu0 0.0
        %286 = vmatpush1.msra.mxu0 %v269
        %287 = vmatprep.subr.mxu0 0.0
        %288 = vmatpush1.msra.mxu0 %v270
        %289 = vmatprep.subr.mxu0 0.0
        %290 = vmatpush1.msra.mxu0 0.0
        %291 = vmatprep.subr.mxu0 0.0
        %292 = vmatpush1.msra.mxu0 0.0
        %293 = vmatprep.subr.mxu0 0.0
        %294 = vmatpush1.msra.mxu0 0.0
        %295 = vmatprep.subr.mxu0 0.0
        %296 = vmatpush1.msra.mxu0 0.0
        %297 = vmatprep.subr.mxu0 0.0
        %298 = vmatpush1.msra.mxu0 0.0
        %299 = vmatprep.subr.mxu0 0.0
        %300 = vmatpush1.msra.mxu0 0.0
        %301 = vmatprep.subr.mxu0 0.0
        %302 = vmatpush1.msra.mxu0 0.0
        %303 = vmatprep.subr.mxu0 0.0
        %304 = vmatpush1.msra.mxu0 0.0
        %305 = vmatprep.subr.mxu0 0.0
        %306 = vmatpush1.msra.mxu0 0.0
        %307 = vmatprep.subr.mxu0 0.0
        %308 = vmatpush1.msra.mxu0 0.0
        %309 = vmatprep.subr.mxu0 0.0
        %310 = vmatpush1.msra.mxu0 0.0
        %311 = vmatprep.subr.mxu0 0.0
        %312 = vmatpush1.msra.mxu0 0.0
        %313 = vmatprep.subr.mxu0 0.0
        %314 = vmatpush1.msra.mxu0 0.0
        %315 = vmatprep.subr.mxu0 0.0
        %316 = vmatpush1.msra.mxu0 0.0
        %317 = vmatprep.subr.mxu0 0.0
        %318 = vmatpush1.msra.mxu0 0.0
        %319 = vmatprep.subr.mxu0 0.0
        %320 = vmatpush1.msra.mxu0 0.0
        %321 = vmatprep.subr.mxu0 0.0
        %322 = vmatpush1.msra.mxu0 0.0
        %323 = vmatprep.subr.mxu0 0.0
        %324 = vmatpush1.msra.mxu0 0.0
        %325 = vmatprep.subr.mxu0 0.0
        %326 = vmatpush1.msra.mxu0 0.0
        %327 = vmatprep.subr.mxu0 0.0
        %328 = vmatpush1.msra.mxu0 0.0
        %329 = vmatprep.subr.mxu0 0.0
        %330 = vmatpush1.msra.mxu0 0.0
        %331 = vmatprep.subr.mxu0 0.0
        %332 = vmatpush1.msra.mxu0 0.0
        %333 = vmatprep.subr.mxu0 0.0
        %334 = vmatpush1.msra.mxu0 0.0
        %335 = vmatprep.subr.mxu0 0.0
        %336 = vmatpush1.msra.mxu0 0.0
        %337 = vmatprep.subr.mxu0 0.0
        %338 = vmatpush1.msra.mxu0 0.0
        %339 = vmatprep.subr.mxu0 0.0
        %340 = vmatpush1.msra.mxu0 0.0
        %341 = vmatprep.subr.mxu0 0.0
        %342 = vmatpush1.msra.mxu0 0.0
        %343 = vmatprep.subr.mxu0 0.0
        %344 = vmatpush1.msra.mxu0 0.0
        %345 = vmatprep.subr.mxu0 0.0
        %346 = vmatpush1.msra.mxu0 0.0
        %347 = vmatprep.subr.mxu0 0.0
        %348 = vmatpush1.msra.mxu0 0.0
        %349 = vmatprep.mubr.f32.mxu0 0.0
        %350 = vmatmul.mubr.f32.gmra.mrb[0].mxu0 %v280
        %v351 = vpop.f32.mrb[0].mxu0
        %v352 = vadd.f32 %v276, %v351
        %v353 = vpop.f32.mrb[0].mxu0
        %354 = vmatprep.mubr.f32.mxu0 0.0
        %355 = vmatmul.mubr.f32.gmra.mrb[0].mxu0 %v283
        %v356 = vpop.f32.mrb[0].mxu0
        %v357 = vadd.f32 %v276, %v356
        %v358 = vpop.f32.mrb[0].mxu0
        %359 = vdwg.mxu0
        %v360 = vmax.f32 %v352, 0.0
        %v361 = vmax.f32 %v357, 0.0
        %vm362 = vcmp.ne.f32.partialorder %v352, %v352
        %vm363 = vcmp.ne.f32.partialorder %v357, %v357
        %v364 = vadd.f32 %v352, 0.0
        %v365 = vadd.f32 %v357, 0.0
        %v366 = vand.u32 2147483647, %v352
        %v367 = vand.u32 2147483647, %v357
        %v368 = vsub.f32 0.0, %v366
        %v369 = vsub.f32 0.0, %v367
        %v370 = vmul.f32 %v368, 1.442695
        %v371 = vpow.pop %v370
        %v372 = vmul.f32 %v369, 1.442695
        %v373 = vpow.pop %v372
        %v374 = vadd.f32 %v371, 1.0
        %v375 = vlog2.pop %v374
        %v376 = vmul.f32 %v375, 0.6931472
        %v377 = vmul.f32 -0.5, %v371
        %v378 = vadd.f32 %v377, 1.0
        %v379 = vmul.f32 %v378, %v371
        %v380 = vand.u32 2147483647, %v371
        %vm381 = vcmp.lt.f32.partialorder %v380, 0.0004427343
        %v382 = vsel %vm381, %v379, %v376
        %v383 = vadd.f32 %v373, 1.0
        %v384 = vlog2.pop %v383
        %v385 = vmul.f32 %v384, 0.6931472
        %v386 = vmul.f32 -0.5, %v373
        %v387 = vadd.f32 %v386, 1.0
        %v388 = vmul.f32 %v387, %v373
        %v389 = vand.u32 2147483647, %v373
        %vm390 = vcmp.lt.f32.partialorder %v389, 0.0004427343
        %v391 = vsel %vm390, %v388, %v385
        %v392 = vadd.f32 %v360, %v382
        %v393 = vadd.f32 %v361, %v391
        %v394 = vsel %vm362, %v364, %v392
        %v395 = vsel %vm363, %v365, %v393
        %v396 = vsub.f32 1.0, %v394
        %v397 = vsub.f32 1.0, %v395
        %400 = vrot.lane.b32.xlu0 %v352, 64
        %v401 = vpop.permute.xlu0 %400
        %402 = vrot.lane.b32.xlu0 %v357, 64
        %v403 = vpop.permute.xlu0 %402
        %v406 = vadd.f32 %v352, %v401
        %v407 = vadd.f32 %v357, %v403
        %410 = vrot.lane.b32.xlu0 %v406, 96
        %v411 = vpop.permute.xlu0 %410
        %412 = vrot.lane.b32.xlu0 %v407, 96
        %v413 = vpop.permute.xlu0 %412
        %v416 = vmul.f32 %v394, %v411
        %v417 = vmul.f32 %v395, %v413
        %v418 = vld [vmem:[#allocation2] sm:$0xff]
        %420 = vrot.lane.b32.xlu0 %v418, 32
        %v421 = vpop.permute.xlu0 %420
        %v423 = vmul.f32 %v396, %v421
        %v424 = vadd.f32 %v423, %v416
        %v425 = vmul.f32 %v397, %v424
        %v426 = vadd.f32 %v425, %v417
        %428 = vrot.lane.b32.xlu0 %v426, 96
        %v429 = vpop.permute.xlu0 %428
        %vm431 = vcmask 261120
        %432 = vst.msk [vmem:[#allocation2] sm:$0xff] %vm431, %v429
        %433 = vrot.lane.b32.xlu0 %v426, 64
        %v434 = vpop.permute.xlu0 %433
        %v436 = vmul.f32 %v357, %v434
        %v437 = vld [vmem:[%s3] sm:$0xff]
        %v438 = vld [vmem:[%s3 + $0x8] sm:$0xff]
        %v439 = vld [vmem:[%s3 + $0x10] sm:$0xff]
        %v440 = vld [vmem:[%s3 + $0x18] sm:$0xff]
        %v441 = vld [vmem:[%s4] sm:$0x1]
        %v443 = vlaneseq
        %v444 = vshrl.u32 %v443, 7
        %v445 = vsub.s32 0, %v444
        %v446 = vrot.slane %v441, %v445
        %449 = vrot.lane.b32.xlu0 %v436, 32
        %v450 = vpop.permute.xlu0 %449
        %v451 = vsel %vm431, %v450, 0
        %453 = vmatprep.subr.mxu0 0.0
        %454 = vmatpush1.msra.mxu0 %v437
        %455 = vmatprep.subr.mxu0 0.0
        %456 = vmatpush1.msra.mxu0 %v438
        %457 = vmatprep.subr.mxu0 0.0
        %458 = vmatpush1.msra.mxu0 %v439
        %459 = vmatprep.subr.mxu0 0.0
        %460 = vmatpush1.msra.mxu0 %v440
        %461 = vmatprep.subr.mxu0 0.0
        %462 = vmatpush1.msra.mxu0 0.0
        %463 = vmatprep.subr.mxu0 0.0
        %464 = vmatpush1.msra.mxu0 0.0
        %465 = vmatprep.subr.mxu0 0.0
        %466 = vmatpush1.msra.mxu0 0.0
        %467 = vmatprep.subr.mxu0 0.0
        %468 = vmatpush1.msra.mxu0 0.0
        %469 = vmatprep.subr.mxu0 0.0
        %470 = vmatpush1.msra.mxu0 0.0
        %471 = vmatprep.subr.mxu0 0.0
        %472 = vmatpush1.msra.mxu0 0.0
        %473 = vmatprep.subr.mxu0 0.0
        %474 = vmatpush1.msra.mxu0 0.0
        %475 = vmatprep.subr.mxu0 0.0
        %476 = vmatpush1.msra.mxu0 0.0
        %477 = vmatprep.subr.mxu0 0.0
        %478 = vmatpush1.msra.mxu0 0.0
        %479 = vmatprep.subr.mxu0 0.0
        %480 = vmatpush1.msra.mxu0 0.0
        %481 = vmatprep.subr.mxu0 0.0
        %482 = vmatpush1.msra.mxu0 0.0
        %483 = vmatprep.subr.mxu0 0.0
        %484 = vmatpush1.msra.mxu0 0.0
        %485 = vmatprep.subr.mxu0 0.0
        %486 = vmatpush1.msra.mxu0 0.0
        %487 = vmatprep.subr.mxu0 0.0
        %488 = vmatpush1.msra.mxu0 0.0
        %489 = vmatprep.subr.mxu0 0.0
        %490 = vmatpush1.msra.mxu0 0.0
        %491 = vmatprep.subr.mxu0 0.0
        %492 = vmatpush1.msra.mxu0 0.0
        %493 = vmatprep.subr.mxu0 0.0
        %494 = vmatpush1.msra.mxu0 0.0
        %495 = vmatprep.subr.mxu0 0.0
        %496 = vmatpush1.msra.mxu0 0.0
        %497 = vmatprep.subr.mxu0 0.0
        %498 = vmatpush1.msra.mxu0 0.0
        %499 = vmatprep.subr.mxu0 0.0
        %500 = vmatpush1.msra.mxu0 0.0
        %501 = vmatprep.subr.mxu0 0.0
        %502 = vmatpush1.msra.mxu0 0.0
        %503 = vmatprep.subr.mxu0 0.0
        %504 = vmatpush1.msra.mxu0 0.0
        %505 = vmatprep.subr.mxu0 0.0
        %506 = vmatpush1.msra.mxu0 0.0
        %507 = vmatprep.subr.mxu0 0.0
        %508 = vmatpush1.msra.mxu0 0.0
        %509 = vmatprep.subr.mxu0 0.0
        %510 = vmatpush1.msra.mxu0 0.0
        %511 = vmatprep.subr.mxu0 0.0
        %512 = vmatpush1.msra.mxu0 0.0
        %513 = vmatprep.subr.mxu0 0.0
        %514 = vmatpush1.msra.mxu0 0.0
        %515 = vmatprep.subr.mxu0 0.0
        %516 = vmatpush1.msra.mxu0 0.0
        %517 = vmatprep.mubr.f32.mxu0 0.0
        %518 = vmatmul.mubr.f32.gmra.mrb[0].mxu0 %v451
        %v519 = vpop.f32.mrb[0].mxu0
        %v520 = vadd.f32 %v446, %v519
        %v521 = vpop.f32.mrb[0].mxu0
        %522 = vdwg.mxu0
        %523 = vst.msk [vmem:[%s260] sm:$0xff] %vm278, %v520
        %s524 = sand.u32 %s156, 1
        %s525 = scalar_lea.sflag [#allocation5], %s524
        %s526 = sand.u32 %s156, 1
        %s527 = smul.addr %s526, 8
        %s528 = scalar_lea.vmem [#allocation6], %s527
        // Predicated region
        $region49: #{tpu_custom_call.1} parent=39 // pred_check
          %p529 = pneg %p166
        $region50: #{tpu_custom_call.1} parent=39 // pred_check_branch
          %531 = sbr.rel (%p529) target = $region52
        $region51: #{tpu_custom_call.1} parent=39 // pred_region
          %s533 = ssub.s32 128, 128
          %534 = vsyncadd %s525, %s533
          %s535 = smul.addr %s26, 4
          %s536 = sadd.s32 %s27, %s535
          %s537 = smul.addr %s536, 128
          %s538 = scalar_lea.hbm %s5, %s537
          %s540 = sshll.u32 %s528, 4
          %s541 = int_to_ptr.vmem [resolvable:$true] %s540
          %543 = dma.vmem_to_hbm [thread:$0]  %s541, 128, %s538, %s525
        $region52: #{tpu_custom_call.1} parent=39 // pred_fallthru
          _
      $region40: #{tpu_custom_call.1} parent=5 // pred_fallthru
        _
      %p544 = scmp.le.s32.totalorder 2, %s17
      // Predicated region
      $region53: #{tpu_custom_call.1} parent=5 // pred_check
        %p545 = pneg %p544
      $region54: #{tpu_custom_call.1} parent=5 // pred_check_branch
        %547 = sbr.rel (%p545) target = $region56
      $region55: #{tpu_custom_call.1} parent=5 // pred_region
        %s548 = ssub.s32 %s17, 2
        // Predicated region
        $region57: #{tpu_custom_call.1} parent=55 // pred_check
          %p549 = pneg %p172
        $region58: #{tpu_custom_call.1} parent=55 // pred_check_branch
          %551 = sbr.rel (%p549) target = $region60
        $region59: #{tpu_custom_call.1} parent=55 // pred_region
          %s552 = sand.u32 %s157, 1
          %s553 = scalar_lea.sflag [#allocation5], %s552
          %s554 = sand.u32 %s157, 1
          %s555 = smul.addr %s554, 8
          %s556 = scalar_lea.vmem [#allocation6], %s555
          %557 = dma.done %s553, 128
        $region60: #{tpu_custom_call.1} parent=55 // pred_fallthru
          _
      $region56: #{tpu_custom_call.1} parent=5 // pred_fallthru
        _
    $region6: #{tpu_custom_call.1} parent=1 // loop_footer
      %s21 = sadd.s32 1, %s17
    $region7: #{tpu_custom_call.1} parent=1 // loop_footer_branch
      %16 = sbr.rel target = $region3
    $region8: #{tpu_custom_call.1} parent=1 // loop_exit
      _
    %558 = vsyncpa [#allocation4], 1
    %s559 = scalar_lea.sflag [#allocation4], 1
    %560 = vsyncpa %s559, 1
    %561 = vsyncpa [#allocation5], 1
    %s562 = scalar_lea.sflag [#allocation5], 1
    %563 = vsyncpa %s562, 1

</llo_original>
